<compile_context>
chip_gen: v5e
topology: v5e:2x2
jax: 0.10.0
libtpu: 0.0.40
codegen_flags: <defaults>
</compile_context>

<pallas_src>
import functools

import jax
import jax.numpy as jnp
from jax.experimental import pallas as pl
from jax.experimental.pallas import tpu as pltpu


def fused_head_kernel(x_ref, wpool_ref, bpool_ref,
                      w1_ref, b1_ref, w2_ref, b2_ref,
                      out_ref, *, batch_size, tile_b, num_labels, pooled_dim):
    x = x_ref[...]                                          # (TB, FEAT) bf16
    feat_pad = x.shape[-1]

    # ---- stage 1: fused HF-style poolers, one K=128 MXU pass ---------------
    # wpool = blockdiag(code_pool_w, text_pool_w, I_filename); tanh only on the
    # pooled lanes, identity pass-through for the filename-embedding lanes.
    z = (jnp.dot(x, wpool_ref[...], preferred_element_type=jnp.float32)
         + bpool_ref[...])
    col = jax.lax.broadcasted_iota(jnp.int32, z.shape, 1)
    fc_in = jnp.where(col < pooled_dim, jnp.tanh(z), z)

    # ---- stage 2: fc1 as a single K=128 dot -> ReLU; Dropout(0.2)=id (eval) -
    h = (jnp.dot(fc_in.astype(jnp.bfloat16), w1_ref[...],
                 preferred_element_type=jnp.float32) + b1_ref[...])
    h = jnp.maximum(h, 0.0)

    # ---- stage 3: fc2, lane-dense (padded to 128) logits --------------------
    logits = (jnp.dot(h.astype(jnp.bfloat16), w2_ref[...],
                      preferred_element_type=jnp.float32) + b2_ref[...])
    nl_pad = logits.shape[-1]

    # ---- per-row cross-entropy (padded lanes/rows + ignore_index masked) ----
    lcol = jax.lax.broadcasted_iota(jnp.int32, logits.shape, 1)
    masked = jnp.where(lcol < num_labels, logits, jnp.float32(-1e30))
    m = jnp.max(masked, axis=-1, keepdims=True)
    lse = jnp.log(jnp.sum(jnp.exp(masked - m), axis=-1, keepdims=True)) + m
    # Label travels in the last lane of the packed slab (exact small int in bf16).
    labels = x[:, feat_pad - 1:feat_pad].astype(jnp.int32)   # (TB, 1)
    picked = jnp.sum(jnp.where(lcol == labels, logits, 0.0),
                     axis=-1, keepdims=True)
    row = (pl.program_id(0) * tile_b
           + jax.lax.broadcasted_iota(jnp.int32, (tile_b, 1), 0))
    valid = (row < batch_size) & (labels >= 0)               # ignore_index < 0
    loss = jnp.where(valid, lse - picked, 0.0)               # (TB, 1) f32

    # ---- single lane-dense bf16 output slab ---------------------------------
    # Lanes [0:num_labels]  : logits (bf16).
    # Lane  nl_pad-2 / -1   : per-row loss split hi/lo bf16 (hi = bf16(loss),
    #                         lo = bf16(loss - f32(hi))) -> wrapper reconstructs
    #                         to ~2^-18 relative error, no width-1 stores.
    loss_hi = loss.astype(jnp.bfloat16)
    loss_lo = (loss - loss_hi.astype(jnp.float32)).astype(jnp.bfloat16)
    out = logits.astype(jnp.bfloat16)
    out = jnp.where(lcol == nl_pad - 2, loss_hi, out)
    out = jnp.where(lcol == nl_pad - 1, loss_lo, out)
    out_ref[...] = out


def pack_head_params(params):
    """One-time packing of head weights (hoisted out of the per-call path)."""
    hc = params["code_pool_w"].shape[0]
    ht = params["text_pool_w"].shape[0]
    hf = params["filename_emb"].shape[1]
    fc_hidden = params["fc1_w"].shape[1]
    num_labels = params["fc2_w"].shape[1]
    feat = hc + ht + hf
    FEAT = ((feat + 1 + 127) // 128) * 128      # >=1 spare lane to carry the label
    NL = ((num_labels + 2 + 127) // 128) * 128  # >=2 spare lanes for loss hi/lo

    # Fused pooler weight: blockdiag(code_pool_w, text_pool_w, I_fn), zero pad.
    wpool = jnp.zeros((FEAT, FEAT), jnp.float32)
    wpool = wpool.at[:hc, :hc].set(params["code_pool_w"])
    wpool = wpool.at[hc:hc + ht, hc:hc + ht].set(params["text_pool_w"])
    wpool = wpool.at[hc + ht:feat, hc + ht:feat].set(jnp.eye(hf, dtype=jnp.float32))
    bpool = jnp.zeros((1, FEAT), jnp.float32)
    bpool = bpool.at[:, :hc].set(params["code_pool_b"])
    bpool = bpool.at[:, hc:hc + ht].set(params["text_pool_b"])

    # fc1 as a single K=FEAT weight (rows beyond `feat` are zero -> same math
    # as the concat in the PyTorch module).
    w1 = jnp.zeros((FEAT, fc_hidden), jnp.float32).at[:feat, :].set(params["fc1_w"])
    b1 = params["fc1_b"].reshape(1, fc_hidden).astype(jnp.float32)

    # fc2 with lane-dense padded output columns (sliced back outside).
    w2 = jnp.zeros((fc_hidden, NL), jnp.float32).at[:, :num_labels].set(params["fc2_w"])
    b2 = jnp.zeros((1, NL), jnp.float32).at[:, :num_labels].set(params["fc2_b"])

    weights = {
        "wpool": wpool.astype(jnp.bfloat16), "bpool": bpool,
        "w1": w1.astype(jnp.bfloat16), "b1": b1,
        "w2": w2.astype(jnp.bfloat16), "b2": b2,
    }
    dims = dict(hc=hc, ht=ht, hf=hf, feat=feat, FEAT=FEAT, NL=NL,
                fc_hidden=fc_hidden, num_labels=num_labels, pooled_dim=hc + ht)
    return weights, dims


def fused_head(code_cls, text_cls, fn_emb, labels, weights, dims, *, tile_b=512):
    B = code_cls.shape[0]
    FEAT, NL = dims["FEAT"], dims["NL"]
    feat, fc_hidden = dims["feat"], dims["fc_hidden"]
    num_labels = dims["num_labels"]

    # Pack features + label into one lane-dense bf16 slab with a single concat:
    # [code | text | fn | 0-pad | label].  bf16 streaming halves input bytes.
    pad_lanes = FEAT - feat - 1
    x = jnp.concatenate(
        [code_cls.astype(jnp.float32), text_cls.astype(jnp.float32),
         fn_emb.astype(jnp.float32),
         jnp.zeros((B, pad_lanes), jnp.float32),
         labels.astype(jnp.float32).reshape(B, 1)],
        axis=1).astype(jnp.bfloat16)

    # Batch tiling: large tiles amortize the ~0.35us/step grid overhead; clamp
    # to the (8-aligned) batch.  Batches > tile_b rows give >=2 tiles so the
    # "parallel" grid axis shards across both TensorCores on v7x.
    B8 = ((B + 7) // 8) * 8
    tile_b = min(tile_b, B8)
    num_tiles = pl.cdiv(B8, tile_b)
    B_pad = num_tiles * tile_b
    x = jnp.pad(x, ((0, B_pad - B), (0, 0)))

    kernel = functools.partial(
        fused_head_kernel, batch_size=B, tile_b=tile_b,
        num_labels=num_labels, pooled_dim=dims["pooled_dim"])

    res = lambda r, c: pl.BlockSpec((r, c), lambda i: (0, 0))   # grid-resident weights
    ins = (x, weights["wpool"], weights["bpool"],
           weights["w1"], weights["b1"], weights["w2"], weights["b2"])
    flops = 2 * B_pad * (FEAT * FEAT + FEAT * fc_hidden + fc_hidden * NL)
    transcendentals = B_pad * (dims["pooled_dim"] + NL)         # tanh + exp
    bytes_accessed = (sum(int(a.size) * a.dtype.itemsize for a in ins)
                      + B_pad * NL * 2)

    slab = pl.pallas_call(
        kernel,
        grid=(num_tiles,),
        in_specs=[
            pl.BlockSpec((tile_b, FEAT), lambda i: (i, 0)),
            res(FEAT, FEAT), res(1, FEAT),
            res(FEAT, fc_hidden), res(1, fc_hidden),
            res(fc_hidden, NL), res(1, NL),
        ],
        out_specs=pl.BlockSpec((tile_b, NL), lambda i: (i, 0)),
        out_shape=jax.ShapeDtypeStruct((B_pad, NL), jnp.bfloat16),
        compiler_params=pltpu.CompilerParams(
            dimension_semantics=("parallel",),
            vmem_limit_bytes=32 * 1024 * 1024),   # fits v7x's 64 MiB VMEM too
        cost_estimate=pl.CostEstimate(
            flops=flops, transcendentals=transcendentals,
            bytes_accessed=bytes_accessed),
    )(*ins)

    logits = slab[:B, :num_labels].astype(jnp.float32)   # bf16-rounded logits
    loss_rows = (slab[:B, NL - 2].astype(jnp.float32)
                 + slab[:B, NL - 1].astype(jnp.float32))
    # CrossEntropyLoss(mean): divide by the number of non-ignored labels.
    n_valid = jnp.maximum(jnp.sum((labels >= 0).astype(jnp.float32)), 1.0)
    loss = jnp.sum(loss_rows) / n_valid
    return logits, loss


def multimodal_forward(params, weights, code_input_ids, code_attention_mask,
                       text_input_ids, text_attention_mask, filename_ids,
                       labels, *, dims):
    # Stand-in encoders: CLS feature = token-embedding lookup; the HF-style
    # pooler (CLS -> dense -> tanh) runs inside the Pallas kernel.
    # (attention masks are accepted but unused by the embedding stand-in)
    del code_attention_mask, text_attention_mask
    code_cls = params["code_tok_emb"][code_input_ids[:, 0]]     # (B, Hc)
    text_cls = params["text_tok_emb"][text_input_ids[:, 0]]     # (B, Ht)
    fn_emb = params["filename_emb"][filename_ids]               # (B, 32)
    return fused_head(code_cls, text_cls, fn_emb, labels, weights, dims)


def init_params(key, vocab=64, num_filenames=10, hc=32, ht=32, fc_hidden=128,
                num_labels=4):
    ks = jax.random.split(key, 12)
    n = lambda k, shape, s=0.02: (s * jax.random.normal(k, shape)).astype(jnp.float32)
    d = hc + ht + 32
    return {
        "code_tok_emb":  n(ks[0], (vocab, hc)),
        "text_tok_emb":  n(ks[1], (vocab, ht)),
        "filename_emb":  n(ks[2], (num_filenames, 32)),
        "code_pool_w":   n(ks[3], (hc, hc)),
        "code_pool_b":   n(ks[4], (1, hc)),
        "text_pool_w":   n(ks[5], (ht, ht)),
        "text_pool_b":   n(ks[6], (1, ht)),
        "fc1_w":         n(ks[7], (d, fc_hidden)),
        "fc1_b":         n(ks[8], (1, fc_hidden)),
        "fc2_w":         n(ks[9], (fc_hidden, num_labels)),
        "fc2_b":         n(ks[10], (1, num_labels)),
    }


if __name__ == "__main__":
    key = jax.random.PRNGKey(0)
    kp, k1, k2, k3, k4 = jax.random.split(key, 5)

    B, S = 2, 8
    vocab, num_filenames, num_labels = 64, 10, 4
    params = init_params(kp, vocab=vocab, num_filenames=num_filenames,
                         num_labels=num_labels)
    # One-time weight packing, hoisted out of the per-call path.
    weights, dims = pack_head_params(params)

    code_input_ids = jax.random.randint(k1, (B, S), 0, vocab, dtype=jnp.int32)
    text_input_ids = jax.random.randint(k2, (B, S), 0, vocab, dtype=jnp.int32)
    code_attention_mask = jnp.ones((B, S), jnp.int32)
    text_attention_mask = jnp.ones((B, S), jnp.int32)
    filename_ids = jax.random.randint(k3, (B,), 0, num_filenames, dtype=jnp.int32)
    labels = jax.random.randint(k4, (B,), 0, num_labels, dtype=jnp.int32)

    fwd = jax.jit(functools.partial(multimodal_forward, dims=dims))
    logits, loss = fwd(params, weights, code_input_ids, code_attention_mask,
                       text_input_ids, text_attention_mask, filename_ids, labels)
    jax.block_until_ready((logits, loss))

    assert logits.shape == (B, num_labels)
    assert jnp.isfinite(loss)
    print("KERNEL_OK")
</pallas_src>

<mosaic_0001>
module attributes {stable_mosaic.version = 11 : i64} {
  func.func @fused_head_kernel(%arg0: i32, %arg1: memref<8x128xbf16, #tpu.memory_space<vmem>>, %arg2: memref<128x128xbf16, #tpu.memory_space<vmem>>, %arg3: memref<1x128xf32, #tpu.memory_space<vmem>>, %arg4: memref<128x128xbf16, #tpu.memory_space<vmem>>, %arg5: memref<1x128xf32, #tpu.memory_space<vmem>>, %arg6: memref<128x128xbf16, #tpu.memory_space<vmem>>, %arg7: memref<1x128xf32, #tpu.memory_space<vmem>>, %arg8: memref<8x128xbf16, #tpu.memory_space<vmem>>) attributes {dimension_semantics = [#tpu.dimension_semantics<parallel>], iteration_bounds = array<i64: 1>, scalar_prefetch = 0 : i64, scratch_operands = 0 : i64, tpu.core_type = #tpu.core_type<tc>, window_params = [{transform_indices = @transform_0, window_bounds = array<i64: 8, 128>}, {pipeline_mode = #tpu.pipeline_mode<synchronous>, transform_indices = @transform_1, window_bounds = array<i64: 128, 128>}, {pipeline_mode = #tpu.pipeline_mode<synchronous>, transform_indices = @transform_2, window_bounds = array<i64: 1, 128>}, {pipeline_mode = #tpu.pipeline_mode<synchronous>, transform_indices = @transform_3, window_bounds = array<i64: 128, 128>}, {pipeline_mode = #tpu.pipeline_mode<synchronous>, transform_indices = @transform_4, window_bounds = array<i64: 1, 128>}, {pipeline_mode = #tpu.pipeline_mode<synchronous>, transform_indices = @transform_5, window_bounds = array<i64: 128, 128>}, {pipeline_mode = #tpu.pipeline_mode<synchronous>, transform_indices = @transform_6, window_bounds = array<i64: 1, 128>}, {transform_indices = @transform_7, window_bounds = array<i64: 8, 128>}]} {
    %c0 = arith.constant 0 : index
    %c0_0 = arith.constant 0 : index
    %0 = vector.load %arg1[%c0, %c0_0] : memref<8x128xbf16, #tpu.memory_space<vmem>>, vector<8x128xbf16>
    %c0_1 = arith.constant 0 : index
    %c0_2 = arith.constant 0 : index
    %1 = vector.load %arg2[%c0_1, %c0_2] : memref<128x128xbf16, #tpu.memory_space<vmem>>, vector<128x128xbf16>
    %cst = arith.constant dense<0.000000e+00> : vector<8x128xf32>
    %2 = tpu.matmul %0, %1, %cst {dimension_numbers = #tpu.dot_dimension_numbers<[1], [0], [0], [1], [0, 0, 1, 1], [], []>} : vector<8x128xbf16>, vector<128x128xbf16>, vector<8x128xf32> -> vector<8x128xf32>
    %c0_3 = arith.constant 0 : index
    %c0_4 = arith.constant 0 : index
    %3 = vector.load %arg3[%c0_3, %c0_4] : memref<1x128xf32, #tpu.memory_space<vmem>>, vector<1x128xf32>
    %4 = vector.broadcast %3 : vector<1x128xf32> to vector<8x128xf32>
    %5 = arith.addf %2, %4 : vector<8x128xf32>
    %6 = tpu.iota {dimensions = array<i32: 1>} : vector<8x128xi32>
    %c64_i32 = arith.constant 64 : i32
    %7 = vector.broadcast %c64_i32 : i32 to vector<8x128xi32>
    %8 = arith.cmpi slt, %6, %7 : vector<8x128xi32>
    %9 = math.tanh %5 : vector<8x128xf32>
    %10 = arith.select %8, %9, %5 : vector<8x128xi1>, vector<8x128xf32>
    %11 = arith.truncf %10 : vector<8x128xf32> to vector<8x128xbf16>
    %c0_5 = arith.constant 0 : index
    %c0_6 = arith.constant 0 : index
    %12 = vector.load %arg4[%c0_5, %c0_6] : memref<128x128xbf16, #tpu.memory_space<vmem>>, vector<128x128xbf16>
    %cst_7 = arith.constant dense<0.000000e+00> : vector<8x128xf32>
    %13 = tpu.matmul %11, %12, %cst_7 {dimension_numbers = #tpu.dot_dimension_numbers<[1], [0], [0], [1], [0, 0, 1, 1], [], []>} : vector<8x128xbf16>, vector<128x128xbf16>, vector<8x128xf32> -> vector<8x128xf32>
    %c0_8 = arith.constant 0 : index
    %c0_9 = arith.constant 0 : index
    %14 = vector.load %arg5[%c0_8, %c0_9] : memref<1x128xf32, #tpu.memory_space<vmem>>, vector<1x128xf32>
    %15 = vector.broadcast %14 : vector<1x128xf32> to vector<8x128xf32>
    %16 = arith.addf %13, %15 : vector<8x128xf32>
    %cst_10 = arith.constant 0.000000e+00 : f32
    %17 = vector.broadcast %cst_10 : f32 to vector<8x128xf32>
    %18 = arith.maximumf %16, %17 : vector<8x128xf32>
    %19 = arith.truncf %18 : vector<8x128xf32> to vector<8x128xbf16>
    %c0_11 = arith.constant 0 : index
    %c0_12 = arith.constant 0 : index
    %20 = vector.load %arg6[%c0_11, %c0_12] : memref<128x128xbf16, #tpu.memory_space<vmem>>, vector<128x128xbf16>
    %cst_13 = arith.constant dense<0.000000e+00> : vector<8x128xf32>
    %21 = tpu.matmul %19, %20, %cst_13 {dimension_numbers = #tpu.dot_dimension_numbers<[1], [0], [0], [1], [0, 0, 1, 1], [], []>} : vector<8x128xbf16>, vector<128x128xbf16>, vector<8x128xf32> -> vector<8x128xf32>
    %c0_14 = arith.constant 0 : index
    %c0_15 = arith.constant 0 : index
    %22 = vector.load %arg7[%c0_14, %c0_15] : memref<1x128xf32, #tpu.memory_space<vmem>>, vector<1x128xf32>
    %23 = vector.broadcast %22 : vector<1x128xf32> to vector<8x128xf32>
    %24 = arith.addf %21, %23 : vector<8x128xf32>
    %25 = tpu.iota {dimensions = array<i32: 1>} : vector<8x128xi32>
    %c4_i32 = arith.constant 4 : i32
    %26 = vector.broadcast %c4_i32 : i32 to vector<8x128xi32>
    %27 = arith.cmpi slt, %25, %26 : vector<8x128xi32>
    %cst_16 = arith.constant -1.000000e+30 : f32
    %28 = vector.broadcast %cst_16 : f32 to vector<8x128xf32>
    %29 = arith.select %27, %24, %28 : vector<8x128xi1>, vector<8x128xf32>
    %cst_17 = arith.constant dense<0xFF800000> : vector<8xf32>
    %30 = vector.multi_reduction <maximumf>, %29, %cst_17 [1] : vector<8x128xf32> to vector<8xf32>
    %31 = vector.shape_cast %30 : vector<8xf32> to vector<8x1xf32>
    %32 = vector.broadcast %31 : vector<8x1xf32> to vector<8x128xf32>
    %33 = arith.subf %29, %32 : vector<8x128xf32>
    %34 = math.exp %33 : vector<8x128xf32>
    %cst_18 = arith.constant dense<0.000000e+00> : vector<8xf32>
    %35 = vector.multi_reduction <add>, %34, %cst_18 [1] : vector<8x128xf32> to vector<8xf32>
    %36 = vector.shape_cast %35 : vector<8xf32> to vector<8x1xf32>
    %37 = math.log %36 : vector<8x1xf32>
    %38 = arith.addf %37, %31 : vector<8x1xf32>
    %39 = vector.extract_strided_slice %0 {offsets = [0, 127], sizes = [8, 1], strides = [1, 1]} : vector<8x128xbf16> to vector<8x1xbf16>
    %40 = arith.fptosi %39 : vector<8x1xbf16> to vector<8x1xi32>
    %41 = vector.broadcast %40 : vector<8x1xi32> to vector<8x128xi32>
    %42 = arith.cmpi eq, %25, %41 : vector<8x128xi32>
    %cst_19 = arith.constant 0.000000e+00 : f32
    %43 = vector.broadcast %cst_19 : f32 to vector<8x128xf32>
    %44 = arith.select %42, %24, %43 : vector<8x128xi1>, vector<8x128xf32>
    %cst_20 = arith.constant dense<0.000000e+00> : vector<8xf32>
    %45 = vector.multi_reduction <add>, %44, %cst_20 [1] : vector<8x128xf32> to vector<8xf32>
    %46 = vector.shape_cast %45 : vector<8xf32> to vector<8x1xf32>
    %c8_i32 = arith.constant 8 : i32
    %47 = arith.muli %arg0, %c8_i32 : i32
    %48 = tpu.iota {dimensions = array<i32: 0>} : vector<8x1xi32>
    %49 = vector.broadcast %47 : i32 to vector<8x1xi32>
    %50 = arith.addi %49, %48 : vector<8x1xi32>
    %c2_i32 = arith.constant 2 : i32
    %51 = vector.broadcast %c2_i32 : i32 to vector<8x1xi32>
    %52 = arith.cmpi slt, %50, %51 : vector<8x1xi32>
    %c0_i32 = arith.constant 0 : i32
    %53 = vector.broadcast %c0_i32 : i32 to vector<8x1xi32>
    %54 = arith.cmpi sge, %40, %53 : vector<8x1xi32>
    %55 = arith.andi %52, %54 : vector<8x1xi1>
    %56 = arith.subf %38, %46 : vector<8x1xf32>
    %cst_21 = arith.constant 0.000000e+00 : f32
    %57 = vector.broadcast %cst_21 : f32 to vector<8x1xf32>
    %58 = arith.select %55, %56, %57 : vector<8x1xi1>, vector<8x1xf32>
    %59 = arith.truncf %58 : vector<8x1xf32> to vector<8x1xbf16>
    %60 = arith.extf %59 : vector<8x1xbf16> to vector<8x1xf32>
    %61 = arith.subf %58, %60 : vector<8x1xf32>
    %62 = arith.truncf %61 : vector<8x1xf32> to vector<8x1xbf16>
    %63 = arith.truncf %24 : vector<8x128xf32> to vector<8x128xbf16>
    %c126_i32 = arith.constant 126 : i32
    %64 = vector.broadcast %c126_i32 : i32 to vector<8x128xi32>
    %65 = arith.cmpi eq, %25, %64 : vector<8x128xi32>
    %66 = vector.shape_cast %59 : vector<8x1xbf16> to vector<8x1xbf16>
    %67 = vector.broadcast %66 : vector<8x1xbf16> to vector<8x128xbf16>
    %68 = arith.select %65, %67, %63 : vector<8x128xi1>, vector<8x128xbf16>
    %c127_i32 = arith.constant 127 : i32
    %69 = vector.broadcast %c127_i32 : i32 to vector<8x128xi32>
    %70 = arith.cmpi eq, %25, %69 : vector<8x128xi32>
    %71 = vector.shape_cast %62 : vector<8x1xbf16> to vector<8x1xbf16>
    %72 = vector.broadcast %71 : vector<8x1xbf16> to vector<8x128xbf16>
    %73 = arith.select %70, %72, %68 : vector<8x128xi1>, vector<8x128xbf16>
    %c0_22 = arith.constant 0 : index
    %c0_23 = arith.constant 0 : index
    %74 = vector.load %arg8[%c0_22, %c0_23] : memref<8x128xbf16, #tpu.memory_space<vmem>>, vector<8x128xbf16>
    tpu.vector_store %arg8[%c0_22, %c0_23], %73 {strides = array<i32>} : memref<8x128xbf16, #tpu.memory_space<vmem>>, vector<8x128xbf16>,
    return
  }
  func.func @transform_0(%arg0: i32) -> (i32, i32) {
    %c0_i32 = arith.constant 0 : i32
    %c0_i32_0 = arith.constant 0 : i32
    return %arg0, %c0_i32 : i32, i32
  }
  func.func @transform_1(%arg0: i32) -> (i32, i32) {
    %c0_i32 = arith.constant 0 : i32
    %c0_i32_0 = arith.constant 0 : i32
    %c0_i32_1 = arith.constant 0 : i32
    return %c0_i32, %c0_i32_0 : i32, i32
  }
  func.func @transform_2(%arg0: i32) -> (i32, i32) {
    %c0_i32 = arith.constant 0 : i32
    %c0_i32_0 = arith.constant 0 : i32
    %c0_i32_1 = arith.constant 0 : i32
    return %c0_i32, %c0_i32_0 : i32, i32
  }
  func.func @transform_3(%arg0: i32) -> (i32, i32) {
    %c0_i32 = arith.constant 0 : i32
    %c0_i32_0 = arith.constant 0 : i32
    %c0_i32_1 = arith.constant 0 : i32
    return %c0_i32, %c0_i32_0 : i32, i32
  }
  func.func @transform_4(%arg0: i32) -> (i32, i32) {
    %c0_i32 = arith.constant 0 : i32
    %c0_i32_0 = arith.constant 0 : i32
    %c0_i32_1 = arith.constant 0 : i32
    return %c0_i32, %c0_i32_0 : i32, i32
  }
  func.func @transform_5(%arg0: i32) -> (i32, i32) {
    %c0_i32 = arith.constant 0 : i32
    %c0_i32_0 = arith.constant 0 : i32
    %c0_i32_1 = arith.constant 0 : i32
    return %c0_i32, %c0_i32_0 : i32, i32
  }
  func.func @transform_6(%arg0: i32) -> (i32, i32) {
    %c0_i32 = arith.constant 0 : i32
    %c0_i32_0 = arith.constant 0 : i32
    %c0_i32_1 = arith.constant 0 : i32
    return %c0_i32, %c0_i32_0 : i32, i32
  }
  func.func @transform_7(%arg0: i32) -> (i32, i32) {
    %c0_i32 = arith.constant 0 : i32
    %c0_i32_0 = arith.constant 0 : i32
    return %arg0, %c0_i32 : i32, i32
  }
}

</mosaic_0001>

<llo_original>
// kernel: multimodal_forward.1
$region0: #{multimodal_forward.1}
  #allocation0 [shape = 'u32[]', space=smem, size = 0x4, offset = 0x4, fixed_abs, tag = 'smem constant byte address 0x4 - core index']
  #allocation1 [shape = 'u32[72,128]{1,0:T(1,128)}', space=vmem, size = 0x9000, scoped, tag = 'internal scratch']
  %s0 = inlined_call_operand.vmem [shape: bf16[8,128], index: 0, kind: input, shape index: {}]
  %s1 = inlined_call_operand.vmem [shape: bf16[128,128], index: 1, kind: input, shape index: {}]
  %s2 = inlined_call_operand.vmem [shape: f32[1,128], index: 2, kind: input, shape index: {}]
  %s3 = inlined_call_operand.vmem [shape: bf16[128,128], index: 3, kind: input, shape index: {}]
  %s4 = inlined_call_operand.vmem [shape: f32[1,128], index: 4, kind: input, shape index: {}]
  %s5 = inlined_call_operand.vmem [shape: bf16[128,128], index: 5, kind: input, shape index: {}]
  %s6 = inlined_call_operand.vmem [shape: f32[1,128], index: 6, kind: input, shape index: {}]
  %s7 = inlined_call_operand.vmem [shape: bf16[8,128], index: 7, kind: output, shape index: {}]
  %s8 = sld [smem:[#allocation0]]
  $region38: #{multimodal_forward.1} parent=0
    _
  %s10 = ssub.s32 1, %s8
  %s11 = scalar_select 0, %s10, %s8
  // Predicated region
  $region2: #{multimodal_forward.1} parent=0 // pred_check
    _
  $region3: #{multimodal_forward.1} parent=0 // pred_check_branch
    %13 = sbr.rel (0) target = $region5
  $region4: #{multimodal_forward.1} parent=0 // pred_region
    _
  $region5: #{multimodal_forward.1} parent=0 // pred_fallthru
    _
  // Predicated region
  $region6: #{multimodal_forward.1} parent=0 // pred_check
    _
  $region7: #{multimodal_forward.1} parent=0 // pred_check_branch
    %15 = sbr.rel (0) target = $region9
  $region8: #{multimodal_forward.1} parent=0 // pred_region
    _
  $region9: #{multimodal_forward.1} parent=0 // pred_fallthru
    _
  // Predicated region
  $region10: #{multimodal_forward.1} parent=0 // pred_check
    _
  $region11: #{multimodal_forward.1} parent=0 // pred_check_branch
    %17 = sbr.rel (0) target = $region13
  $region12: #{multimodal_forward.1} parent=0 // pred_region
    _
  $region13: #{multimodal_forward.1} parent=0 // pred_fallthru
    _
  // Predicated region
  $region14: #{multimodal_forward.1} parent=0 // pred_check
    _
  $region15: #{multimodal_forward.1} parent=0 // pred_check_branch
    %19 = sbr.rel (0) target = $region17
  $region16: #{multimodal_forward.1} parent=0 // pred_region
    _
  $region17: #{multimodal_forward.1} parent=0 // pred_fallthru
    _
  // Predicated region
  $region18: #{multimodal_forward.1} parent=0 // pred_check
    _
  $region19: #{multimodal_forward.1} parent=0 // pred_check_branch
    %21 = sbr.rel (0) target = $region21
  $region20: #{multimodal_forward.1} parent=0 // pred_region
    _
  $region21: #{multimodal_forward.1} parent=0 // pred_fallthru
    _
  // Predicated region
  $region22: #{multimodal_forward.1} parent=0 // pred_check
    _
  $region23: #{multimodal_forward.1} parent=0 // pred_check_branch
    %23 = sbr.rel (0) target = $region25
  $region24: #{multimodal_forward.1} parent=0 // pred_region
    _
  $region25: #{multimodal_forward.1} parent=0 // pred_fallthru
    _
  // Predicated region
  $region26: #{multimodal_forward.1} parent=0 // pred_check
    _
  $region27: #{multimodal_forward.1} parent=0 // pred_check_branch
    %25 = sbr.rel (0) target = $region29
  $region28: #{multimodal_forward.1} parent=0 // pred_region
    _
  $region29: #{multimodal_forward.1} parent=0 // pred_fallthru
    _
  %v26 = vld [vmem:[%s0] sm:$0xf]
  %v27 = vld [vmem:[%s1] sm:$0xf]
  %v28 = vld [vmem:[%s1 + $0x4] sm:$0xf]
  %v29 = vld [vmem:[%s1 + $0x8] sm:$0xf]
  %v30 = vld [vmem:[%s1 + $0xc] sm:$0xf]
  %v31 = vld [vmem:[%s1 + $0x10] sm:$0xf]
  %v32 = vld [vmem:[%s1 + $0x14] sm:$0xf]
  %v33 = vld [vmem:[%s1 + $0x18] sm:$0xf]
  %v34 = vld [vmem:[%s1 + $0x1c] sm:$0xf]
  %v35 = vld [vmem:[%s1 + $0x20] sm:$0xf]
  %v36 = vld [vmem:[%s1 + $0x24] sm:$0xf]
  %v37 = vld [vmem:[%s1 + $0x28] sm:$0xf]
  %v38 = vld [vmem:[%s1 + $0x2c] sm:$0xf]
  %v39 = vld [vmem:[%s1 + $0x30] sm:$0xf]
  %v40 = vld [vmem:[%s1 + $0x34] sm:$0xf]
  %v41 = vld [vmem:[%s1 + $0x38] sm:$0xf]
  %v42 = vld [vmem:[%s1 + $0x3c] sm:$0xf]
  %v43 = vld [vmem:[%s2] sm:$0x1]
  %v45 = vperm.slane %v43, 0
  %v63 = vunpack.c.l.b16 %v27
  %v64 = vunpack.c.l.b16 %v28
  %v65 = vunpack.c.l.b16 %v29
  %v66 = vunpack.c.l.b16 %v30
  %v67 = vunpack.c.l.b16 %v31
  %v68 = vunpack.c.l.b16 %v32
  %v69 = vunpack.c.l.b16 %v33
  %v70 = vunpack.c.l.b16 %v34
  %v71 = vunpack.c.l.b16 %v35
  %v72 = vunpack.c.l.b16 %v36
  %v73 = vunpack.c.l.b16 %v37
  %v74 = vunpack.c.l.b16 %v38
  %v75 = vunpack.c.l.b16 %v39
  %v76 = vunpack.c.l.b16 %v40
  %v77 = vunpack.c.l.b16 %v41
  %v78 = vunpack.c.l.b16 %v42
  %v79 = vpack.c.b16 %v64, %v63
  %v80 = vpack.c.b16 %v66, %v65
  %v81 = vpack.c.b16 %v68, %v67
  %v82 = vpack.c.b16 %v70, %v69
  %v83 = vpack.c.b16 %v72, %v71
  %v84 = vpack.c.b16 %v74, %v73
  %v85 = vpack.c.b16 %v76, %v75
  %v86 = vpack.c.b16 %v78, %v77
  %95 = vmatpush.bf16.msra.mxu0 %v86
  %96 = vmatpush.bf16.msra.mxu0 %v85
  %97 = vmatpush.bf16.msra.mxu0 %v84
  %98 = vmatpush.bf16.msra.mxu0 %v83
  %99 = vmatpush.bf16.msra.mxu0 %v82
  %100 = vmatpush.bf16.msra.mxu0 %v81
  %101 = vmatpush.bf16.msra.mxu0 %v80
  %102 = vmatpush.bf16.msra.mxu0 %v79
  %103 = vmatmul.bf16.gmra.mxu0 %v26
  %v104 = vpop.f32.mrf.mxu0
  %v105 = vadd.f32 %v45, %v104
  %v106 = vpop.f32.mrf.mxu0
  %107 = vdwg.mxu0
  %v108 = vlaneseq
  %v109 = vand.u32 %v108, 127
  %vm110 = vcmp.lt.s32.totalorder %v109, 64
  %v111 = vtanh.pop %v105
  %v112 = vsel %vm110, %v111, %v105
  %v113 = vpack.c.bf16 %v112, %v112
  %v114 = vld [vmem:[%s3] sm:$0xf]
  %v115 = vld [vmem:[%s3 + $0x4] sm:$0xf]
  %v116 = vld [vmem:[%s3 + $0x8] sm:$0xf]
  %v117 = vld [vmem:[%s3 + $0xc] sm:$0xf]
  %v118 = vld [vmem:[%s3 + $0x10] sm:$0xf]
  %v119 = vld [vmem:[%s3 + $0x14] sm:$0xf]
  %v120 = vld [vmem:[%s3 + $0x18] sm:$0xf]
  %v121 = vld [vmem:[%s3 + $0x1c] sm:$0xf]
  %v122 = vld [vmem:[%s3 + $0x20] sm:$0xf]
  %v123 = vld [vmem:[%s3 + $0x24] sm:$0xf]
  %v124 = vld [vmem:[%s3 + $0x28] sm:$0xf]
  %v125 = vld [vmem:[%s3 + $0x2c] sm:$0xf]
  %v126 = vld [vmem:[%s3 + $0x30] sm:$0xf]
  %v127 = vld [vmem:[%s3 + $0x34] sm:$0xf]
  %v128 = vld [vmem:[%s3 + $0x38] sm:$0xf]
  %v129 = vld [vmem:[%s3 + $0x3c] sm:$0xf]
  %v130 = vld [vmem:[%s4] sm:$0x1]
  %v132 = vperm.slane %v130, 0
  %v150 = vunpack.c.l.b16 %v114
  %v151 = vunpack.c.l.b16 %v115
  %v152 = vunpack.c.l.b16 %v116
  %v153 = vunpack.c.l.b16 %v117
  %v154 = vunpack.c.l.b16 %v118
  %v155 = vunpack.c.l.b16 %v119
  %v156 = vunpack.c.l.b16 %v120
  %v157 = vunpack.c.l.b16 %v121
  %v158 = vunpack.c.l.b16 %v122
  %v159 = vunpack.c.l.b16 %v123
  %v160 = vunpack.c.l.b16 %v124
  %v161 = vunpack.c.l.b16 %v125
  %v162 = vunpack.c.l.b16 %v126
  %v163 = vunpack.c.l.b16 %v127
  %v164 = vunpack.c.l.b16 %v128
  %v165 = vunpack.c.l.b16 %v129
  %v166 = vpack.c.b16 %v151, %v150
  %v167 = vpack.c.b16 %v153, %v152
  %v168 = vpack.c.b16 %v155, %v154
  %v169 = vpack.c.b16 %v157, %v156
  %v170 = vpack.c.b16 %v159, %v158
  %v171 = vpack.c.b16 %v161, %v160
  %v172 = vpack.c.b16 %v163, %v162
  %v173 = vpack.c.b16 %v165, %v164
  %182 = vmatpush.bf16.msra.mxu0 %v173
  %183 = vmatpush.bf16.msra.mxu0 %v172
  %184 = vmatpush.bf16.msra.mxu0 %v171
  %185 = vmatpush.bf16.msra.mxu0 %v170
  %186 = vmatpush.bf16.msra.mxu0 %v169
  %187 = vmatpush.bf16.msra.mxu0 %v168
  %188 = vmatpush.bf16.msra.mxu0 %v167
  %189 = vmatpush.bf16.msra.mxu0 %v166
  %190 = vmatmul.bf16.gmra.mxu0 %v113
  %v191 = vpop.f32.mrf.mxu0
  %v192 = vadd.f32 %v132, %v191
  %v193 = vpop.f32.mrf.mxu0
  %194 = vdwg.mxu0
  %v195 = vmax.f32 %v192, 0.0
  %v196 = vpack.c.bf16 %v195, %v195
  %v197 = vld [vmem:[%s5] sm:$0xf]
  %v198 = vld [vmem:[%s5 + $0x4] sm:$0xf]
  %v199 = vld [vmem:[%s5 + $0x8] sm:$0xf]
  %v200 = vld [vmem:[%s5 + $0xc] sm:$0xf]
  %v201 = vld [vmem:[%s5 + $0x10] sm:$0xf]
  %v202 = vld [vmem:[%s5 + $0x14] sm:$0xf]
  %v203 = vld [vmem:[%s5 + $0x18] sm:$0xf]
  %v204 = vld [vmem:[%s5 + $0x1c] sm:$0xf]
  %v205 = vld [vmem:[%s5 + $0x20] sm:$0xf]
  %v206 = vld [vmem:[%s5 + $0x24] sm:$0xf]
  %v207 = vld [vmem:[%s5 + $0x28] sm:$0xf]
  %v208 = vld [vmem:[%s5 + $0x2c] sm:$0xf]
  %v209 = vld [vmem:[%s5 + $0x30] sm:$0xf]
  %v210 = vld [vmem:[%s5 + $0x34] sm:$0xf]
  %v211 = vld [vmem:[%s5 + $0x38] sm:$0xf]
  %v212 = vld [vmem:[%s5 + $0x3c] sm:$0xf]
  %v213 = vld [vmem:[%s6] sm:$0x1]
  %v215 = vperm.slane %v213, 0
  %v233 = vunpack.c.l.b16 %v197
  %v234 = vunpack.c.l.b16 %v198
  %v235 = vunpack.c.l.b16 %v199
  %v236 = vunpack.c.l.b16 %v200
  %v237 = vunpack.c.l.b16 %v201
  %v238 = vunpack.c.l.b16 %v202
  %v239 = vunpack.c.l.b16 %v203
  %v240 = vunpack.c.l.b16 %v204
  %v241 = vunpack.c.l.b16 %v205
  %v242 = vunpack.c.l.b16 %v206
  %v243 = vunpack.c.l.b16 %v207
  %v244 = vunpack.c.l.b16 %v208
  %v245 = vunpack.c.l.b16 %v209
  %v246 = vunpack.c.l.b16 %v210
  %v247 = vunpack.c.l.b16 %v211
  %v248 = vunpack.c.l.b16 %v212
  %v249 = vpack.c.b16 %v234, %v233
  %v250 = vpack.c.b16 %v236, %v235
  %v251 = vpack.c.b16 %v238, %v237
  %v252 = vpack.c.b16 %v240, %v239
  %v253 = vpack.c.b16 %v242, %v241
  %v254 = vpack.c.b16 %v244, %v243
  %v255 = vpack.c.b16 %v246, %v245
  %v256 = vpack.c.b16 %v248, %v247
  %265 = vmatpush.bf16.msra.mxu0 %v256
  %266 = vmatpush.bf16.msra.mxu0 %v255
  %267 = vmatpush.bf16.msra.mxu0 %v254
  %268 = vmatpush.bf16.msra.mxu0 %v253
  %269 = vmatpush.bf16.msra.mxu0 %v252
  %270 = vmatpush.bf16.msra.mxu0 %v251
  %271 = vmatpush.bf16.msra.mxu0 %v250
  %272 = vmatpush.bf16.msra.mxu0 %v249
  %273 = vmatmul.bf16.gmra.mxu0 %v196
  %v274 = vpop.f32.mrf.mxu0
  %v275 = vadd.f32 %v215, %v274
  %v276 = vpop.f32.mrf.mxu0
  %277 = vdwg.mxu0
  %vm278 = vcmp.lt.s32.totalorder %v109, 4
  %v279 = vsel %vm278, %v275, -1e+30
  %280 = vmax.xlane.f32.xlu0 %v279
  %v281 = vpop.xlane.xlu0 %280
  %v282 = vsub.f32 %v279, %v281
  %v283 = vmul.f32 %v282, 1.442695
  %v284 = vpow.pop %v283
  %285 = vadd.xlane.f32.xlu0 %v284
  %v286 = vpop.xlane.xlu0 %285
  %v287 = vlog2.pop %v286
  %v288 = vmul.f32 %v287, 0.6931472
  %v289 = vadd.f32 %v288, %v281
  %v290 = vunpack.c.l.bf16 %v26
  %v291 = vcvt.f32.s32.to.zero.pseudo %v290
  %292 = vset.pattern.permute.xlu0 127
  %293 = vperm.xlu0 %292, %v291
  %v294 = vpop.permute.xlu0 %293
  %vm295 = vcmp.eq.s32.totalorder %v109, %v294
  %v296 = vsel %vm295, %v275, 0.0
  %297 = vadd.xlane.f32.xlu0 %v296
  %v298 = vpop.xlane.xlu0 %297
  %s299 = smul.u32 0, 8
  %v300 = vlaneseq
  %v301 = vshrl.u32 %v300, 7
  %v302 = vstv %s299
  %v303 = vadd.s32 %v302, %v301
  %vm304 = vcmp.lt.s32.totalorder %v303, 2
  %vm305 = vcmp.ge.s32.totalorder %v291, 0
  %vm306 = vmand %vm304, %vm305
  %v307 = vsub.f32 %v289, %v298
  %v308 = vsel %vm306, %v307, 0.0
  %v309 = vpack.c.bf16 %v308, %v308
  %v310 = vunpack.c.l.bf16 %v309
  %v311 = vsub.f32 %v308, %v310
  %v312 = vpack.c.bf16 %v311, %v311
  %v313 = vpack.c.bf16 %v275, %v275
  %vm314 = vcmp.eq.s32.totalorder %v109, 126
  %316 = vset.pattern.permute.xlu0 127
  %317 = vperm.xlu0 %316, %v309
  %v318 = vpop.permute.xlu0 %317
  %v321 = vunpack.c.l.s4 839922192
  %v322 = vunpack.c.0.s8 %v321
  %v323 = vperm.slane %v318, %v322
  %vm324 = vmpackc.low %vm314, %vm314
  %v325 = vsel %vm324, %v323, %v313
  %vm326 = vcmp.eq.s32.totalorder %v109, 127
  %328 = vset.pattern.permute.xlu0 127
  %329 = vperm.xlu0 %328, %v312
  %v330 = vpop.permute.xlu0 %329
  %v333 = vunpack.c.l.s4 839922192
  %v334 = vunpack.c.0.s8 %v333
  %v335 = vperm.slane %v330, %v334
  %vm336 = vmpackc.low %vm326, %vm326
  %v337 = vsel %vm336, %v335, %v325
  %338 = vst [vmem:[%s7] sm:$0xf] %v337
  // Predicated region
  $region30: #{multimodal_forward.1} parent=0 // pred_check
    _
  $region31: #{multimodal_forward.1} parent=0 // pred_check_branch
    %340 = sbr.rel (0) target = $region33
  $region32: #{multimodal_forward.1} parent=0 // pred_region
    _
  $region33: #{multimodal_forward.1} parent=0 // pred_fallthru
    _
  // Predicated region
  $region34: #{multimodal_forward.1} parent=0 // pred_check
    _
  $region35: #{multimodal_forward.1} parent=0 // pred_check_branch
    %342 = sbr.rel (0) target = $region37
  $region36: #{multimodal_forward.1} parent=0 // pred_region
    _
  $region37: #{multimodal_forward.1} parent=0 // pred_fallthru
    _

</llo_original>
